<compile_context>
chip_gen: v5e
topology: v5e:2x2
jax: 0.10.0
libtpu: 0.0.40
codegen_flags: <defaults>
</compile_context>

<pallas_src>
import functools
import math

import jax
import jax.numpy as jnp
from jax.experimental import pallas as pl
from jax.experimental.pallas import tpu as pltpu

EPS = 1e-5                      # GPT2 layer_norm_epsilon, also used by the decoder
NEG_INF = -1e30                 # plain python float (scores are f32)
VMEM_LIMIT = 48 * 1024 * 1024   # below v7x's 64 MiB physical, above 16/32 MiB defaults


# --------------------------- in-kernel helpers ------------------------------

def _ln(x, g, b, eps=EPS):
    """LayerNorm over the last axis; statistics in f32. g/b are (1, D)."""
    mu = jnp.mean(x, axis=-1, keepdims=True)
    var = jnp.mean((x - mu) ** 2, axis=-1, keepdims=True)
    return (x - mu) * jax.lax.rsqrt(var + eps) * g + b


def _mha(h2d, wqkv, bqkv, wo, bo, *, bt, s, n_head, causal):
    """Fused multi-head self-attention on a (bt*s, D) f32 slab.

    The big matmuls (QKV, folded out-proj) run on all bt*s rows; the (S, S)
    score/context matmuls are batched over the bt batch rows of the tile.
    bf16 MXU inputs, f32 accumulation, no concat/transpose around attention.
    """
    rows, d = h2d.shape
    hd = d // n_head
    scale = 1.0 / math.sqrt(hd)

    qkv = jnp.dot(h2d.astype(jnp.bfloat16), wqkv,
                  preferred_element_type=jnp.float32) + bqkv        # (rows, 3D)
    qkv_b = qkv.astype(jnp.bfloat16).reshape(bt, s, 3 * d)          # cast slab ONCE

    if causal:
        ri = jax.lax.broadcasted_iota(jnp.int32, (bt, s, s), 1)
        ci = jax.lax.broadcasted_iota(jnp.int32, (bt, s, s), 2)
        keep = ci <= ri

    acc = None
    for hh in range(n_head):                       # n_head static -> unrolled
        q = qkv_b[:, :, hh * hd:(hh + 1) * hd]                      # (bt, s, hd)
        k = qkv_b[:, :, d + hh * hd:d + (hh + 1) * hd]
        v = qkv_b[:, :, 2 * d + hh * hd:2 * d + (hh + 1) * hd]
        sc = jnp.einsum('bqh,bkh->bqk', q, k,
                        preferred_element_type=jnp.float32) * scale  # (bt, s, s)
        if causal:
            sc = jnp.where(keep, sc, NEG_INF)
        m = jnp.max(sc, axis=-1, keepdims=True)
        e = jnp.exp(sc - m)
        p = e * pl.reciprocal(jnp.sum(e, axis=-1, keepdims=True), approx=True)
        o_h = jnp.einsum('bqk,bkh->bqh', p.astype(jnp.bfloat16), v,
                         preferred_element_type=jnp.float32)         # (bt, s, hd)
        # attn_out @ W_o == sum_h o_h @ W_o[h*hd:(h+1)*hd, :]  (folded out-proj)
        contrib = jnp.dot(o_h.reshape(rows, hd).astype(jnp.bfloat16),
                          wo[hh * hd:(hh + 1) * hd, :],
                          preferred_element_type=jnp.float32)
        acc = contrib if acc is None else acc + contrib
    return acc + bo


# ------------------------------ Pallas kernels ------------------------------

def _token_kernel(x_ref, m_ref, fe_w, fe_b, bi_w, bi_b, g1_w, g1_b, g2_w, g2_b,
                  fp_w, fp_b, wpe_ref, o_ref):
    """generate_token (mask_rate > 0 path) + GPT2 wpe add for one batch tile."""
    bt, p_num, p_len = x_ref.shape
    rows = bt * p_num
    x = x_ref[...].astype(jnp.bfloat16).reshape(rows, p_len)
    m = m_ref[...].astype(jnp.bfloat16).reshape(rows, p_len)
    xe = jnp.dot(x, fe_w[...], preferred_element_type=jnp.float32) + fe_b[...]
    me = jnp.dot(m, bi_w[...], preferred_element_type=jnp.float32) + bi_b[...]
    g = jax.nn.sigmoid(
        jnp.dot(xe.astype(jnp.bfloat16), g1_w[...],
                preferred_element_type=jnp.float32) + g1_b[...]
        + jnp.dot(me.astype(jnp.bfloat16), g2_w[...],
                  preferred_element_type=jnp.float32) + g2_b[...])
    fused = g * xe + (1.0 - g) * me
    proj = jnp.dot(fused.astype(jnp.bfloat16), fp_w[...],
                   preferred_element_type=jnp.float32) + fp_b[...]
    d = proj.shape[-1]
    out = proj.reshape(bt, p_num, d) + wpe_ref[...]   # ts_embed_dropout: identity
    o_ref[...] = out.astype(o_ref.dtype)


def _stack_kernel(x_ref, ln1_g, ln1_b, wqkv, bqkv, wo, bo, ln2_g, ln2_b,
                  w1, b1, w2, b2, lnf_g, lnf_b, o_ref, h_ref,
                  *, n_head, gpt2_style, final_ln):
    """One grid step = one transformer layer applied to one batch tile.

    grid = (batch_tiles, n_layers); layer weights are indexed by the inner
    ("arbitrary") axis so their DMA pipelines behind compute. The residual
    stream lives in the persistent f32 VMEM scratch h_ref across layers.

    gpt2_style=True : pre-LN causal block with gelu_new MLP (GPT2).
    gpt2_style=False: nn.TransformerEncoderLayer (post-LN, ReLU FF, no mask).
    """
    layer = pl.program_id(1)
    bt, s, d = x_ref.shape
    rows = bt * s

    @pl.when(layer == 0)
    def _():
        h_ref[...] = x_ref[...].astype(jnp.float32).reshape(rows, d)

    h = h_ref[...]                                                 # (rows, D) f32

    # ---- self attention ----
    x_att = _ln(h, ln1_g[0], ln1_b[0]) if gpt2_style else h
    attn = _mha(x_att, wqkv[0], bqkv[0], wo[0], bo[0],
                bt=bt, s=s, n_head=n_head, causal=gpt2_style)

    if gpt2_style:
        h = h + attn
        x_ff = _ln(h, ln2_g[0], ln2_b[0])
    else:
        h = _ln(h + attn, ln1_g[0], ln1_b[0])
        x_ff = h

    # ---- feed forward ----
    f = jnp.dot(x_ff.astype(jnp.bfloat16), w1[0],
                preferred_element_type=jnp.float32) + b1[0]
    f = jax.nn.gelu(f, approximate=True) if gpt2_style else jnp.maximum(f, 0.0)
    f = jnp.dot(f.astype(jnp.bfloat16), w2[0],
                preferred_element_type=jnp.float32) + b2[0]

    h = (h + f) if gpt2_style else _ln(h + f, ln2_g[0], ln2_b[0])

    h_ref[...] = h

    @pl.when(layer == pl.num_programs(1) - 1)
    def _():
        h_out = _ln(h, lnf_g[...], lnf_b[...]) if final_ln else h
        o_ref[...] = h_out.reshape(bt, s, d).astype(o_ref.dtype)


def _head_kernel(x_ref, w_ref, b_ref, o_ref, acc_ref):
    """FlattenHead linear, tiled over the P*D contraction axis."""
    @pl.when(pl.program_id(0) == 0)
    def _():
        acc_ref[...] = jnp.zeros_like(acc_ref)
    acc_ref[...] += jnp.dot(x_ref[...].astype(jnp.bfloat16), w_ref[...],
                            preferred_element_type=jnp.float32)
    @pl.when(pl.program_id(0) == pl.num_programs(0) - 1)
    def _():
        o_ref[...] = acc_ref[...] + b_ref[...]


# ------------------------------ call wrappers --------------------------------

def _pick_batch_tile(b, s, override=None, target_rows=256):
    """Largest divisor of b whose tile has >= ~target_rows rows (or override)."""
    bt = min(override, b) if override is not None else max(1, min(b, target_rows // max(s, 1)))
    while b % bt:
        bt -= 1
    return bt


def _pick_k_tile(k, target=512):
    if k <= target:
        return k
    t = (target // 128) * 128
    while t >= 128:
        if k % t == 0:
            return t
        t -= 128
    return k


def generate_token(xp, mp, params, d, batch_tile):
    b, p_num, p_len = xp.shape
    wpe = params['wpe'][:p_num]                       # (P, D) f32
    num_bt = b // batch_tile
    args = (xp, mp,
            params['fe_w'], params['fe_b'], params['bi_w'], params['bi_b'],
            params['g1_w'], params['g1_b'], params['g2_w'], params['g2_b'],
            params['fp_w'], params['fp_b'], wpe)

    def const_spec(a):
        return pl.BlockSpec(a.shape, lambda i: (0,) * a.ndim)

    io_spec = pl.BlockSpec((batch_tile, p_num, p_len), lambda i: (i, 0, 0))
    return pl.pallas_call(
        _token_kernel,
        out_shape=jax.ShapeDtypeStruct((b, p_num, d), jnp.bfloat16),
        grid=(num_bt,),
        in_specs=[io_spec, io_spec] + [const_spec(a) for a in args[2:]],
        out_specs=pl.BlockSpec((batch_tile, p_num, d), lambda i: (i, 0, 0)),
        compiler_params=pltpu.CompilerParams(
            dimension_semantics=("parallel",), vmem_limit_bytes=VMEM_LIMIT),
    )(*args)


def transformer_stack(h, ws, lnf_g, lnf_b, *, n_head, gpt2_style, final_ln,
                      batch_tile):
    """Run a whole stack of layers (stacked (L, ...) weights) in one pallas_call."""
    b, s, d = h.shape
    n_layers = ws[0].shape[0]
    num_bt = b // batch_tile

    act_spec = pl.BlockSpec((batch_tile, s, d), lambda i, l: (i, 0, 0))
    w_specs = [pl.BlockSpec((1,) + tuple(w.shape[1:]), lambda i, l: (l, 0, 0))
               for w in ws]
    lnf_spec = pl.BlockSpec(lnf_g.shape, lambda i, l: (0, 0))

    return pl.pallas_call(
        functools.partial(_stack_kernel, n_head=n_head,
                          gpt2_style=gpt2_style, final_ln=final_ln),
        out_shape=jax.ShapeDtypeStruct((b, s, d), jnp.bfloat16),
        grid=(num_bt, n_layers),
        in_specs=[act_spec] + w_specs + [lnf_spec, lnf_spec],
        out_specs=act_spec,
        scratch_shapes=[pltpu.VMEM((batch_tile * s, d), jnp.float32)],
        compiler_params=pltpu.CompilerParams(
            dimension_semantics=("parallel", "arbitrary"),
            vmem_limit_bytes=VMEM_LIMIT),
    )(h, *ws, lnf_g, lnf_b)


def flatten_head(flat, w, b):
    m, k = flat.shape
    n = w.shape[1]
    tk = _pick_k_tile(k)
    nk = k // tk
    return pl.pallas_call(
        _head_kernel,
        out_shape=jax.ShapeDtypeStruct((m, n), jnp.float32),
        grid=(nk,),
        in_specs=[pl.BlockSpec((m, tk), lambda ki: (0, ki)),
                  pl.BlockSpec((tk, n), lambda ki: (ki, 0)),
                  pl.BlockSpec((1, n), lambda ki: (0, 0))],
        out_specs=pl.BlockSpec((m, n), lambda ki: (0, 0)),
        scratch_shapes=[pltpu.VMEM((m, n), jnp.float32)],
        compiler_params=pltpu.CompilerParams(
            dimension_semantics=("arbitrary",), vmem_limit_bytes=VMEM_LIMIT),
    )(flat, w, b)


# ------------------------------ model forward --------------------------------

def unitime_forward(params, x, mask, cfg):
    b, length = x.shape
    patch_len, stride = cfg['patch_len'], cfg['stride']
    d, n_head = cfg['dim_llm'], cfg['n_head']
    patch_num = (length - patch_len) // stride + 1
    bt = _pick_batch_tile(b, patch_num, cfg.get('batch_tile'))

    # torch.Tensor.unfold(-1, patch_len, stride)  (cheap gather, done in JAX)
    idx = jnp.arange(patch_num)[:, None] * stride + jnp.arange(patch_len)[None, :]
    xp = x[:, idx]                                    # (B, P, patch_len)
    mp = mask[:, idx]

    # generate_token (mask_rate > 0 path) + wpe add, one fused kernel.
    h = generate_token(xp, mp, params, d, bt)         # (B, P, D) bf16

    # GPT2 backbone: all pre-LN causal blocks + ln_f in one pipelined pallas_call.
    gpt2_ws = [params['g_ln1_g'], params['g_ln1_b'],
               params['g_wqkv'], params['g_bqkv'], params['g_wo'], params['g_bo'],
               params['g_ln2_g'], params['g_ln2_b'],
               params['g_w1'], params['g_b1'], params['g_w2'], params['g_b2']]
    h = transformer_stack(h, gpt2_ws, params['lnf_g'], params['lnf_b'],
                          n_head=n_head, gpt2_style=True, final_ln=True,
                          batch_tile=bt)

    # dec_transformer: all TransformerEncoderLayers in one pipelined pallas_call.
    dec_ws = [params['d_ln1_g'], params['d_ln1_b'],
              params['d_wqkv'], params['d_bqkv'], params['d_wo'], params['d_bo'],
              params['d_ln2_g'], params['d_ln2_b'],
              params['d_w1'], params['d_b1'], params['d_w2'], params['d_b2']]
    h = transformer_stack(h, dec_ws, params['lnf_g'], params['lnf_b'],
                          n_head=n_head, gpt2_style=False, final_ln=False,
                          batch_tile=bt)

    # FlattenHead: flatten(start_dim=-2) + Linear(dim_llm*patch_num, len_reduce)
    flat = h.reshape(b, patch_num * d)
    return flatten_head(flat, params['head_w'], params['head_b'])


# --------------------------- deterministic params ----------------------------

def _lin(key, din, dout, std=0.02):
    """Matmul weights stored bf16 (MXU inputs / smaller DMA); biases f32."""
    kw, kb = jax.random.split(key)
    w = (std * jax.random.normal(kw, (din, dout), jnp.float32)).astype(jnp.bfloat16)
    bias = std * jax.random.normal(kb, (1, dout), jnp.float32)
    return w, bias


def _lin_stack(key, n_layers, din, dout, std=0.02):
    kw, kb = jax.random.split(key)
    w = (std * jax.random.normal(kw, (n_layers, din, dout), jnp.float32)
         ).astype(jnp.bfloat16)
    bias = std * jax.random.normal(kb, (n_layers, 1, dout), jnp.float32)
    return w, bias


def init_params(key, cfg):
    d, patch_len = cfg['dim_llm'], cfg['patch_len']
    keys = iter(jax.random.split(key, 64))
    p = {}
    p['fe_w'], p['fe_b'] = _lin(next(keys), patch_len, d)   # feature_embedding
    p['bi_w'], p['bi_b'] = _lin(next(keys), patch_len, d)   # binary_indicator_embedding
    p['g1_w'], p['g1_b'] = _lin(next(keys), d, d)           # gate_w1
    p['g2_w'], p['g2_b'] = _lin(next(keys), d, d)           # gate_w2
    p['fp_w'], p['fp_b'] = _lin(next(keys), d, d)           # feature_projection
    p['wpe'] = 0.02 * jax.random.normal(next(keys), (cfg['max_pos'], d), jnp.float32)

    def make_stack(prefix, n_layers):
        p[prefix + 'ln1_g'] = jnp.ones((n_layers, 1, d), jnp.float32)
        p[prefix + 'ln1_b'] = jnp.zeros((n_layers, 1, d), jnp.float32)
        p[prefix + 'ln2_g'] = jnp.ones((n_layers, 1, d), jnp.float32)
        p[prefix + 'ln2_b'] = jnp.zeros((n_layers, 1, d), jnp.float32)
        p[prefix + 'wqkv'], p[prefix + 'bqkv'] = _lin_stack(next(keys), n_layers, d, 3 * d)
        p[prefix + 'wo'], p[prefix + 'bo'] = _lin_stack(next(keys), n_layers, d, d)
        p[prefix + 'w1'], p[prefix + 'b1'] = _lin_stack(next(keys), n_layers, d, 4 * d)
        p[prefix + 'w2'], p[prefix + 'b2'] = _lin_stack(next(keys), n_layers, 4 * d, d)

    make_stack('g_', cfg['llm_layers'])     # GPT2 backbone
    make_stack('d_', cfg['dec_layernum'])   # decoder TransformerEncoder
    p['lnf_g'] = jnp.ones((1, d), jnp.float32)
    p['lnf_b'] = jnp.zeros((1, d), jnp.float32)

    patch_num = (cfg['len_series'] - cfg['patch_len']) // cfg['stride'] + 1
    p['head_w'], p['head_b'] = _lin(next(keys), d * patch_num, cfg['len_reduce'])
    return p


# ----------------------------------- main ------------------------------------

if __name__ == '__main__':
    cfg = dict(
        len_series=64, patch_len=8, stride=8,     # patch_num = 8
        dim_llm=128, n_head=4,                    # head_dim = 32, lane-dense D
        llm_layers=2, dec_layernum=1,
        len_reduce=32, mask_rate=0.5, max_pos=1024,
        batch_tile=2,                             # 2 batch tiles -> exercises grid
    )
    batch = 4

    key = jax.random.PRNGKey(0)
    kx, km, kp = jax.random.split(key, 3)
    x = jax.random.normal(kx, (batch, cfg['len_series']), jnp.float32)
    mask = (jax.random.uniform(km, (batch, cfg['len_series']))
            > cfg['mask_rate']).astype(jnp.float32)
    params = init_params(kp, cfg)

    out = unitime_forward(params, x, mask, cfg)
    out = jax.block_until_ready(out)

    assert out.shape == (batch, cfg['len_reduce']), out.shape
    assert bool(jnp.all(jnp.isfinite(out)))
    print("KERNEL_OK")
</pallas_src>

<mosaic_0001>
module attributes {stable_mosaic.version = 11 : i64} {
  func.func @_token_kernel(%arg0: i32, %arg1: memref<2x8x8xf32, #tpu.memory_space<vmem>>, %arg2: memref<2x8x8xf32, #tpu.memory_space<vmem>>, %arg3: memref<8x128xbf16, #tpu.memory_space<vmem>>, %arg4: memref<1x128xf32, #tpu.memory_space<vmem>>, %arg5: memref<8x128xbf16, #tpu.memory_space<vmem>>, %arg6: memref<1x128xf32, #tpu.memory_space<vmem>>, %arg7: memref<128x128xbf16, #tpu.memory_space<vmem>>, %arg8: memref<1x128xf32, #tpu.memory_space<vmem>>, %arg9: memref<128x128xbf16, #tpu.memory_space<vmem>>, %arg10: memref<1x128xf32, #tpu.memory_space<vmem>>, %arg11: memref<128x128xbf16, #tpu.memory_space<vmem>>, %arg12: memref<1x128xf32, #tpu.memory_space<vmem>>, %arg13: memref<8x128xf32, #tpu.memory_space<vmem>>, %arg14: memref<2x8x128xbf16, #tpu.memory_space<vmem>>) attributes {dimension_semantics = [#tpu.dimension_semantics<parallel>], iteration_bounds = array<i64: 2>, scalar_prefetch = 0 : i64, scratch_operands = 0 : i64, tpu.core_type = #tpu.core_type<tc>, window_params = [{transform_indices = @transform_0, window_bounds = array<i64: 2, 8, 8>}, {transform_indices = @transform_1, window_bounds = array<i64: 2, 8, 8>}, {pipeline_mode = #tpu.pipeline_mode<synchronous>, transform_indices = @transform_2, window_bounds = array<i64: 8, 128>}, {pipeline_mode = #tpu.pipeline_mode<synchronous>, transform_indices = @transform_3, window_bounds = array<i64: 1, 128>}, {pipeline_mode = #tpu.pipeline_mode<synchronous>, transform_indices = @transform_4, window_bounds = array<i64: 8, 128>}, {pipeline_mode = #tpu.pipeline_mode<synchronous>, transform_indices = @transform_5, window_bounds = array<i64: 1, 128>}, {pipeline_mode = #tpu.pipeline_mode<synchronous>, transform_indices = @transform_6, window_bounds = array<i64: 128, 128>}, {pipeline_mode = #tpu.pipeline_mode<synchronous>, transform_indices = @transform_7, window_bounds = array<i64: 1, 128>}, {pipeline_mode = #tpu.pipeline_mode<synchronous>, transform_indices = @transform_8, window_bounds = array<i64: 128, 128>}, {pipeline_mode = #tpu.pipeline_mode<synchronous>, transform_indices = @transform_9, window_bounds = array<i64: 1, 128>}, {pipeline_mode = #tpu.pipeline_mode<synchronous>, transform_indices = @transform_10, window_bounds = array<i64: 128, 128>}, {pipeline_mode = #tpu.pipeline_mode<synchronous>, transform_indices = @transform_11, window_bounds = array<i64: 1, 128>}, {pipeline_mode = #tpu.pipeline_mode<synchronous>, transform_indices = @transform_12, window_bounds = array<i64: 8, 128>}, {transform_indices = @transform_13, window_bounds = array<i64: 2, 8, 128>}]} {
    %c0 = arith.constant 0 : index
    %c0_0 = arith.constant 0 : index
    %c0_1 = arith.constant 0 : index
    %0 = vector.load %arg1[%c0, %c0_0, %c0_1] : memref<2x8x8xf32, #tpu.memory_space<vmem>>, vector<2x8x8xf32>
    %1 = arith.truncf %0 : vector<2x8x8xf32> to vector<2x8x8xbf16>
    %2 = vector.shape_cast %1 : vector<2x8x8xbf16> to vector<16x8xbf16>
    %c0_2 = arith.constant 0 : index
    %c0_3 = arith.constant 0 : index
    %c0_4 = arith.constant 0 : index
    %3 = vector.load %arg2[%c0_2, %c0_3, %c0_4] : memref<2x8x8xf32, #tpu.memory_space<vmem>>, vector<2x8x8xf32>
    %4 = arith.truncf %3 : vector<2x8x8xf32> to vector<2x8x8xbf16>
    %5 = vector.shape_cast %4 : vector<2x8x8xbf16> to vector<16x8xbf16>
    %c0_5 = arith.constant 0 : index
    %c0_6 = arith.constant 0 : index
    %6 = vector.load %arg3[%c0_5, %c0_6] : memref<8x128xbf16, #tpu.memory_space<vmem>>, vector<8x128xbf16>
    %cst = arith.constant dense<0.000000e+00> : vector<16x128xf32>
    %7 = tpu.matmul %2, %6, %cst {dimension_numbers = #tpu.dot_dimension_numbers<[1], [0], [0], [1], [0, 0, 1, 1], [], []>} : vector<16x8xbf16>, vector<8x128xbf16>, vector<16x128xf32> -> vector<16x128xf32>
    %c0_7 = arith.constant 0 : index
    %c0_8 = arith.constant 0 : index
    %8 = vector.load %arg4[%c0_7, %c0_8] : memref<1x128xf32, #tpu.memory_space<vmem>>, vector<1x128xf32>
    %9 = vector.broadcast %8 : vector<1x128xf32> to vector<16x128xf32>
    %10 = arith.addf %7, %9 : vector<16x128xf32>
    %c0_9 = arith.constant 0 : index
    %c0_10 = arith.constant 0 : index
    %11 = vector.load %arg5[%c0_9, %c0_10] : memref<8x128xbf16, #tpu.memory_space<vmem>>, vector<8x128xbf16>
    %cst_11 = arith.constant dense<0.000000e+00> : vector<16x128xf32>
    %12 = tpu.matmul %5, %11, %cst_11 {dimension_numbers = #tpu.dot_dimension_numbers<[1], [0], [0], [1], [0, 0, 1, 1], [], []>} : vector<16x8xbf16>, vector<8x128xbf16>, vector<16x128xf32> -> vector<16x128xf32>
    %c0_12 = arith.constant 0 : index
    %c0_13 = arith.constant 0 : index
    %13 = vector.load %arg6[%c0_12, %c0_13] : memref<1x128xf32, #tpu.memory_space<vmem>>, vector<1x128xf32>
    %14 = vector.broadcast %13 : vector<1x128xf32> to vector<16x128xf32>
    %15 = arith.addf %12, %14 : vector<16x128xf32>
    %16 = arith.truncf %10 : vector<16x128xf32> to vector<16x128xbf16>
    %c0_14 = arith.constant 0 : index
    %c0_15 = arith.constant 0 : index
    %17 = vector.load %arg7[%c0_14, %c0_15] : memref<128x128xbf16, #tpu.memory_space<vmem>>, vector<128x128xbf16>
    %cst_16 = arith.constant dense<0.000000e+00> : vector<16x128xf32>
    %18 = tpu.matmul %16, %17, %cst_16 {dimension_numbers = #tpu.dot_dimension_numbers<[1], [0], [0], [1], [0, 0, 1, 1], [], []>} : vector<16x128xbf16>, vector<128x128xbf16>, vector<16x128xf32> -> vector<16x128xf32>
    %c0_17 = arith.constant 0 : index
    %c0_18 = arith.constant 0 : index
    %19 = vector.load %arg8[%c0_17, %c0_18] : memref<1x128xf32, #tpu.memory_space<vmem>>, vector<1x128xf32>
    %20 = vector.broadcast %19 : vector<1x128xf32> to vector<16x128xf32>
    %21 = arith.addf %18, %20 : vector<16x128xf32>
    %22 = arith.truncf %15 : vector<16x128xf32> to vector<16x128xbf16>
    %c0_19 = arith.constant 0 : index
    %c0_20 = arith.constant 0 : index
    %23 = vector.load %arg9[%c0_19, %c0_20] : memref<128x128xbf16, #tpu.memory_space<vmem>>, vector<128x128xbf16>
    %cst_21 = arith.constant dense<0.000000e+00> : vector<16x128xf32>
    %24 = tpu.matmul %22, %23, %cst_21 {dimension_numbers = #tpu.dot_dimension_numbers<[1], [0], [0], [1], [0, 0, 1, 1], [], []>} : vector<16x128xbf16>, vector<128x128xbf16>, vector<16x128xf32> -> vector<16x128xf32>
    %25 = arith.addf %21, %24 : vector<16x128xf32>
    %c0_22 = arith.constant 0 : index
    %c0_23 = arith.constant 0 : index
    %26 = vector.load %arg10[%c0_22, %c0_23] : memref<1x128xf32, #tpu.memory_space<vmem>>, vector<1x128xf32>
    %27 = vector.broadcast %26 : vector<1x128xf32> to vector<16x128xf32>
    %28 = arith.addf %25, %27 : vector<16x128xf32>
    %29 = arith.negf %28 : vector<16x128xf32>
    %30 = math.exp %29 : vector<16x128xf32>
    %cst_24 = arith.constant 1.000000e+00 : f32
    %31 = vector.broadcast %cst_24 : f32 to vector<16x128xf32>
    %32 = arith.addf %31, %30 : vector<16x128xf32>
    %33 = arith.divf %31, %32 : vector<16x128xf32>
    %34 = arith.mulf %33, %10 : vector<16x128xf32>
    %cst_25 = arith.constant 1.000000e+00 : f32
    %35 = vector.broadcast %cst_25 : f32 to vector<16x128xf32>
    %36 = arith.subf %35, %33 : vector<16x128xf32>
    %37 = arith.mulf %36, %15 : vector<16x128xf32>
    %38 = arith.addf %34, %37 : vector<16x128xf32>
    %39 = arith.truncf %38 : vector<16x128xf32> to vector<16x128xbf16>
    %c0_26 = arith.constant 0 : index
    %c0_27 = arith.constant 0 : index
    %40 = vector.load %arg11[%c0_26, %c0_27] : memref<128x128xbf16, #tpu.memory_space<vmem>>, vector<128x128xbf16>
    %cst_28 = arith.constant dense<0.000000e+00> : vector<16x128xf32>
    %41 = tpu.matmul %39, %40, %cst_28 {dimension_numbers = #tpu.dot_dimension_numbers<[1], [0], [0], [1], [0, 0, 1, 1], [], []>} : vector<16x128xbf16>, vector<128x128xbf16>, vector<16x128xf32> -> vector<16x128xf32>
    %c0_29 = arith.constant 0 : index
    %c0_30 = arith.constant 0 : index
    %42 = vector.load %arg12[%c0_29, %c0_30] : memref<1x128xf32, #tpu.memory_space<vmem>>, vector<1x128xf32>
    %43 = vector.broadcast %42 : vector<1x128xf32> to vector<16x128xf32>
    %44 = arith.addf %41, %43 : vector<16x128xf32>
    %45 = vector.shape_cast %44 : vector<16x128xf32> to vector<2x8x128xf32>
    %c0_31 = arith.constant 0 : index
    %c0_32 = arith.constant 0 : index
    %46 = vector.load %arg13[%c0_31, %c0_32] : memref<8x128xf32, #tpu.memory_space<vmem>>, vector<8x128xf32>
    %47 = vector.shape_cast %46 : vector<8x128xf32> to vector<1x8x128xf32>
    %48 = vector.broadcast %47 : vector<1x8x128xf32> to vector<2x8x128xf32>
    %49 = arith.addf %45, %48 : vector<2x8x128xf32>
    %50 = arith.truncf %49 : vector<2x8x128xf32> to vector<2x8x128xbf16>
    %c0_33 = arith.constant 0 : index
    %c0_34 = arith.constant 0 : index
    %c0_35 = arith.constant 0 : index
    %51 = vector.load %arg14[%c0_33, %c0_34, %c0_35] : memref<2x8x128xbf16, #tpu.memory_space<vmem>>, vector<2x8x128xbf16>
    tpu.vector_store %arg14[%c0_33, %c0_34, %c0_35], %50 {strides = array<i32>} : memref<2x8x128xbf16, #tpu.memory_space<vmem>>, vector<2x8x128xbf16>,
    return
  }
  func.func @transform_0(%arg0: i32) -> (i32, i32, i32) {
    %c0_i32 = arith.constant 0 : i32
    %c0_i32_0 = arith.constant 0 : i32
    %c0_i32_1 = arith.constant 0 : i32
    return %arg0, %c0_i32, %c0_i32_0 : i32, i32, i32
  }
  func.func @transform_1(%arg0: i32) -> (i32, i32, i32) {
    %c0_i32 = arith.constant 0 : i32
    %c0_i32_0 = arith.constant 0 : i32
    %c0_i32_1 = arith.constant 0 : i32
    return %arg0, %c0_i32, %c0_i32_0 : i32, i32, i32
  }
  func.func @transform_2(%arg0: i32) -> (i32, i32) {
    %c0_i32 = arith.constant 0 : i32
    %c0_i32_0 = arith.constant 0 : i32
    %c0_i32_1 = arith.constant 0 : i32
    return %c0_i32, %c0_i32_0 : i32, i32
  }
  func.func @transform_3(%arg0: i32) -> (i32, i32) {
    %c0_i32 = arith.constant 0 : i32
    %c0_i32_0 = arith.constant 0 : i32
    %c0_i32_1 = arith.constant 0 : i32
    return %c0_i32, %c0_i32_0 : i32, i32
  }
  func.func @transform_4(%arg0: i32) -> (i32, i32) {
    %c0_i32 = arith.constant 0 : i32
    %c0_i32_0 = arith.constant 0 : i32
    %c0_i32_1 = arith.constant 0 : i32
    return %c0_i32, %c0_i32_0 : i32, i32
  }
  func.func @transform_5(%arg0: i32) -> (i32, i32) {
    %c0_i32 = arith.constant 0 : i32
    %c0_i32_0 = arith.constant 0 : i32
    %c0_i32_1 = arith.constant 0 : i32
    return %c0_i32, %c0_i32_0 : i32, i32
  }
  func.func @transform_6(%arg0: i32) -> (i32, i32) {
    %c0_i32 = arith.constant 0 : i32
    %c0_i32_0 = arith.constant 0 : i32
    %c0_i32_1 = arith.constant 0 : i32
    return %c0_i32, %c0_i32_0 : i32, i32
  }
  func.func @transform_7(%arg0: i32) -> (i32, i32) {
    %c0_i32 = arith.constant 0 : i32
    %c0_i32_0 = arith.constant 0 : i32
    %c0_i32_1 = arith.constant 0 : i32
    return %c0_i32, %c0_i32_0 : i32, i32
  }
  func.func @transform_8(%arg0: i32) -> (i32, i32) {
    %c0_i32 = arith.constant 0 : i32
    %c0_i32_0 = arith.constant 0 : i32
    %c0_i32_1 = arith.constant 0 : i32
    return %c0_i32, %c0_i32_0 : i32, i32
  }
  func.func @transform_9(%arg0: i32) -> (i32, i32) {
    %c0_i32 = arith.constant 0 : i32
    %c0_i32_0 = arith.constant 0 : i32
    %c0_i32_1 = arith.constant 0 : i32
    return %c0_i32, %c0_i32_0 : i32, i32
  }
  func.func @transform_10(%arg0: i32) -> (i32, i32) {
    %c0_i32 = arith.constant 0 : i32
    %c0_i32_0 = arith.constant 0 : i32
    %c0_i32_1 = arith.constant 0 : i32
    return %c0_i32, %c0_i32_0 : i32, i32
  }
  func.func @transform_11(%arg0: i32) -> (i32, i32) {
    %c0_i32 = arith.constant 0 : i32
    %c0_i32_0 = arith.constant 0 : i32
    %c0_i32_1 = arith.constant 0 : i32
    return %c0_i32, %c0_i32_0 : i32, i32
  }
  func.func @transform_12(%arg0: i32) -> (i32, i32) {
    %c0_i32 = arith.constant 0 : i32
    %c0_i32_0 = arith.constant 0 : i32
    %c0_i32_1 = arith.constant 0 : i32
    return %c0_i32, %c0_i32_0 : i32, i32
  }
  func.func @transform_13(%arg0: i32) -> (i32, i32, i32) {
    %c0_i32 = arith.constant 0 : i32
    %c0_i32_0 = arith.constant 0 : i32
    %c0_i32_1 = arith.constant 0 : i32
    return %arg0, %c0_i32, %c0_i32_0 : i32, i32, i32
  }
}

</mosaic_0001>

<llo_original>
// kernel: tpu_custom_call.1
$region0: #{tpu_custom_call.1}
  #allocation0 [shape = 'u32[]', space=smem, size = 0x4, offset = 0x4, fixed_abs, tag = 'smem constant byte address 0x4 - core index']
  #allocation1 [shape = 'u32[72,128]{1,0:T(1,128)}', space=vmem, size = 0x9000, scoped, tag = 'internal scratch']
  %s0 = inlined_call_operand.hbm [shape: f32[4,8,8], index: 0, kind: input, shape index: {}]
  %s1 = inlined_call_operand.hbm [shape: f32[4,8,8], index: 1, kind: input, shape index: {}]
  %s2 = inlined_call_operand.hbm [shape: bf16[8,128], index: 2, kind: input, shape index: {}]
  %s3 = inlined_call_operand.vmem [shape: f32[1,128], index: 3, kind: input, shape index: {}]
  %s4 = inlined_call_operand.hbm [shape: bf16[8,128], index: 4, kind: input, shape index: {}]
  %s5 = inlined_call_operand.vmem [shape: f32[1,128], index: 5, kind: input, shape index: {}]
  %s6 = inlined_call_operand.hbm [shape: bf16[128,128], index: 6, kind: input, shape index: {}]
  %s7 = inlined_call_operand.vmem [shape: f32[1,128], index: 7, kind: input, shape index: {}]
  %s8 = inlined_call_operand.hbm [shape: bf16[128,128], index: 8, kind: input, shape index: {}]
  %s9 = inlined_call_operand.hbm [shape: f32[1,128], index: 9, kind: input, shape index: {}]
  %s10 = inlined_call_operand.hbm [shape: bf16[128,128], index: 10, kind: input, shape index: {}]
  %s11 = inlined_call_operand.hbm [shape: f32[1,128], index: 11, kind: input, shape index: {}]
  %s12 = inlined_call_operand.vmem [shape: f32[8,128], index: 12, kind: input, shape index: {}]
  %s13 = inlined_call_operand.hbm [shape: bf16[4,8,128], index: 13, kind: output, shape index: {}]
  %s14 = sld [smem:[#allocation0]]
  $region121: #{tpu_custom_call.1} parent=0
    _
  %s16 = ssub.s32 1, %s14
  %s17 = scalar_select 0, %s16, %s14
  $region1: #{tpu_custom_call.1} parent=0
    #allocation2 [shape = 'u8[16384]{0}', space=vmem, size = 0x4000, scoped, tag = 'input window, operand 0']
    #allocation3 [shape = 's32[2]{0}', space=sflag, size = 0x8, scoped, tag = 'scoped memory for tpu_custom_call.1']
    #allocation4 [shape = 's32[2]{0}', space=sflag, size = 0x8, scoped, tag = 'scoped memory for tpu_custom_call.1']
    #allocation5 [shape = 'u8[16384]{0}', space=vmem, size = 0x4000, scoped, tag = 'input window, operand 1']
    #allocation6 [shape = 's32[2]{0}', space=sflag, size = 0x8, scoped, tag = 'scoped memory for tpu_custom_call.1']
    #allocation7 [shape = 'u8[2048]{0}', space=vmem, size = 0x800, scoped, tag = 'input window, operand 2, single buffered']
    #allocation8 [shape = 'u8[2048]{0}', space=vmem, size = 0x800, scoped, tag = 'input window, operand 4, single buffered']
    #allocation9 [shape = 's32[1]{0}', space=sflag, size = 0x4, scoped, tag = 'scoped memory for tpu_custom_call.1']
    #allocation10 [shape = 'u8[32768]{0}', space=vmem, size = 0x8000, scoped, tag = 'input window, operand 6, single buffered']
    #allocation11 [shape = 'u8[32768]{0}', space=vmem, size = 0x8000, scoped, tag = 'input window, operand 8, single buffered']
    #allocation12 [shape = 's32[1]{0}', space=sflag, size = 0x4, scoped, tag = 'scoped memory for tpu_custom_call.1']
    #allocation13 [shape = 'u8[512]{0}', space=vmem, size = 0x400, scoped, tag = 'input window, operand 9, single buffered']
    #allocation14 [shape = 'u8[32768]{0}', space=vmem, size = 0x8000, scoped, tag = 'input window, operand 10, single buffered']
    #allocation15 [shape = 's32[1]{0}', space=sflag, size = 0x4, scoped, tag = 'scoped memory for tpu_custom_call.1']
    #allocation16 [shape = 'u8[512]{0}', space=vmem, size = 0x400, scoped, tag = 'input window, operand 11, single buffered']
    #allocation17 [shape = 'u8[8192]{0}', space=vmem, size = 0x2000, scoped, tag = 'output window, operand 0']
    %18 = vsyncpa [#allocation3], 0
    %s19 = scalar_lea.sflag [#allocation3], 1
    %20 = vsyncpa %s19, 0
    %21 = vsyncpa [#allocation6], 0
    %s22 = scalar_lea.sflag [#allocation6], 1
    %23 = vsyncpa %s22, 0
    %24 = vsyncpa [#allocation9], 0
    %25 = vsyncpa [#allocation12], 0
    %26 = vsyncpa [#allocation15], 0
    %27 = vsyncpa [#allocation4], 0
    %s28 = scalar_lea.sflag [#allocation4], 1
    %29 = vsyncpa %s28, 0
    loop: start=0, step=1, limit=4
    $region2: #{tpu_custom_call.1} parent=1 // loop_pre_header
      _
    $region3: #{tpu_custom_call.1} parent=1 // loop_header
      %s31 = sphi 0, %s35
      %p32 = scmp.ge.s32.totalorder %s31, 4
      %s41 = sphi 0, %s43
      %s44 = sphi 0, %s41
      %s45 = sphi 0, %s44
      %s61 = sphi 0, %s45
      %s67 = sphi 0, %s69
      %s70 = sphi 0, %s67
      %s71 = sphi 0, %s70
      %s87 = sphi 0, %s71
      %s91 = sphi 0, %s91
      %s93 = sphi 0, %s91
      %s94 = sphi 0, %s93
      %s108 = sphi 0, %s94
      %s112 = sphi 0, %s112
      %s114 = sphi 0, %s112
      %s115 = sphi 0, %s114
      %s129 = sphi 0, %s115
      %s133 = sphi 0, %s133
      %s135 = sphi 0, %s133
      %s136 = sphi 0, %s135
      %s150 = sphi 0, %s136
      %s154 = sphi 0, %s154
      %s156 = sphi 0, %s154
      %s157 = sphi 0, %s156
      %s171 = sphi 0, %s157
      %s175 = sphi 0, %s175
      %s177 = sphi 0, %s175
      %s178 = sphi 0, %s177
      %s192 = sphi 0, %s178
      %s196 = sphi 0, %s196
      %s198 = sphi 0, %s196
      %s199 = sphi 0, %s198
      %s213 = sphi 0, %s199
      %s217 = sphi 0, %s217
      %s219 = sphi 0, %s217
      %s220 = sphi 0, %s219
      %s234 = sphi 0, %s220
      %s238 = sphi 0, %s238
      %s240 = sphi 0, %s238
      %s241 = sphi 0, %s240
      %s255 = sphi 0, %s241
      %s259 = sphi 0, %s259
      %s261 = sphi 0, %s259
      %s262 = sphi 0, %s261
      %s276 = sphi 0, %s262
      %s280 = sphi 0, %s280
      %s282 = sphi 0, %s280
      %s283 = sphi 0, %s282
      %s297 = sphi 0, %s283
      %s301 = sphi 0, %s301
      %s303 = sphi 0, %s301
      %s304 = sphi 0, %s303
      %s318 = sphi 0, %s304
      %s324 = sphi 0, %s326
      %s327 = sphi 0, %s324
      %s328 = sphi 0, %s327
      %s344 = sphi 0, %s328
    $region4: #{tpu_custom_call.1} parent=1 // loop_header_branch
      %34 = sbr.rel (%p32) target = $region8
    $region5: #{tpu_custom_call.1} parent=1 // loop_body
      %s36 = ssub.s32 %s31, 1
      %s37 = ssub.s32 %s31, 2
      %s38 = sadd.s32 %s31, 1
      %s39 = ssub.s32 %s31, %s38
      %p40 = scmp.eq.s32.totalorder %s39, 0
      %s42 = sadd.s32 %s41, 1
      %s43 = scalar_select %p40, %s41, %s42
      %p46 = pneg %p40
      %p47 = scmp.eq.s32.totalorder %s31, 1
      %p48 = por %p46, %p47
      %p49 = scmp.ne.s32.totalorder %s41, %s44
      %p50 = scmp.eq.s32.totalorder %s31, 0
      %p51 = por %p49, %p50
      %p52 = scmp.ne.s32.totalorder %s41, %s44
      %p53 = scmp.eq.s32.totalorder %s36, 1
      %p54 = por %p52, %p53
      %p55 = scmp.ne.s32.totalorder %s44, %s45
      %p56 = scmp.eq.s32.totalorder %s36, 0
      %p57 = por %p55, %p56
      %p58 = scmp.ne.s32.totalorder %s44, %s45
      %p59 = scmp.eq.s32.totalorder %s37, 1
      %p60 = por %p58, %p59
      %p62 = scmp.ne.s32.totalorder %s45, %s61
      %p63 = scmp.eq.s32.totalorder %s37, 0
      %p64 = por %p62, %p63
      %s65 = ssub.s32 %s31, %s38
      %p66 = scmp.eq.s32.totalorder %s65, 0
      %s68 = sadd.s32 %s67, 1
      %s69 = scalar_select %p66, %s67, %s68
      %p72 = pneg %p66
      %p73 = scmp.eq.s32.totalorder %s31, 1
      %p74 = por %p72, %p73
      %p75 = scmp.ne.s32.totalorder %s67, %s70
      %p76 = scmp.eq.s32.totalorder %s31, 0
      %p77 = por %p75, %p76
      %p78 = scmp.ne.s32.totalorder %s67, %s70
      %p79 = scmp.eq.s32.totalorder %s36, 1
      %p80 = por %p78, %p79
      %p81 = scmp.ne.s32.totalorder %s70, %s71
      %p82 = scmp.eq.s32.totalorder %s36, 0
      %p83 = por %p81, %p82
      %p84 = scmp.ne.s32.totalorder %s70, %s71
      %p85 = scmp.eq.s32.totalorder %s37, 1
      %p86 = por %p84, %p85
      %p88 = scmp.ne.s32.totalorder %s71, %s87
      %p89 = scmp.eq.s32.totalorder %s37, 0
      %p90 = por %p88, %p89
      %s92 = sadd.s32 %s91, 1
      %p95 = scmp.eq.s32.totalorder %s31, 1
      %p96 = scmp.ne.s32.totalorder %s91, %s93
      %p97 = scmp.eq.s32.totalorder %s31, 0
      %p98 = por %p96, %p97
      %p99 = scmp.ne.s32.totalorder %s91, %s93
      %p100 = scmp.eq.s32.totalorder %s36, 1
      %p101 = por %p99, %p100
      %p102 = scmp.ne.s32.totalorder %s93, %s94
      %p103 = scmp.eq.s32.totalorder %s36, 0
      %p104 = por %p102, %p103
      %p105 = scmp.ne.s32.totalorder %s93, %s94
      %p106 = scmp.eq.s32.totalorder %s37, 1
      %p107 = por %p105, %p106
      %p109 = scmp.ne.s32.totalorder %s94, %s108
      %p110 = scmp.eq.s32.totalorder %s37, 0
      %p111 = por %p109, %p110
      %s113 = sadd.s32 %s112, 1
      %p116 = scmp.eq.s32.totalorder %s31, 1
      %p117 = scmp.ne.s32.totalorder %s112, %s114
      %p118 = scmp.eq.s32.totalorder %s31, 0
      %p119 = por %p117, %p118
      %p120 = scmp.ne.s32.totalorder %s112, %s114
      %p121 = scmp.eq.s32.totalorder %s36, 1
      %p122 = por %p120, %p121
      %p123 = scmp.ne.s32.totalorder %s114, %s115
      %p124 = scmp.eq.s32.totalorder %s36, 0
      %p125 = por %p123, %p124
      %p126 = scmp.ne.s32.totalorder %s114, %s115
      %p127 = scmp.eq.s32.totalorder %s37, 1
      %p128 = por %p126, %p127
      %p130 = scmp.ne.s32.totalorder %s115, %s129
      %p131 = scmp.eq.s32.totalorder %s37, 0
      %p132 = por %p130, %p131
      %s134 = sadd.s32 %s133, 1
      %p137 = scmp.eq.s32.totalorder %s31, 1
      %p138 = scmp.ne.s32.totalorder %s133, %s135
      %p139 = scmp.eq.s32.totalorder %s31, 0
      %p140 = por %p138, %p139
      %p141 = scmp.ne.s32.totalorder %s133, %s135
      %p142 = scmp.eq.s32.totalorder %s36, 1
      %p143 = por %p141, %p142
      %p144 = scmp.ne.s32.totalorder %s135, %s136
      %p145 = scmp.eq.s32.totalorder %s36, 0
      %p146 = por %p144, %p145
      %p147 = scmp.ne.s32.totalorder %s135, %s136
      %p148 = scmp.eq.s32.totalorder %s37, 1
      %p149 = por %p147, %p148
      %p151 = scmp.ne.s32.totalorder %s136, %s150
      %p152 = scmp.eq.s32.totalorder %s37, 0
      %p153 = por %p151, %p152
      %s155 = sadd.s32 %s154, 1
      %p158 = scmp.eq.s32.totalorder %s31, 1
      %p159 = scmp.ne.s32.totalorder %s154, %s156
      %p160 = scmp.eq.s32.totalorder %s31, 0
      %p161 = por %p159, %p160
      %p162 = scmp.ne.s32.totalorder %s154, %s156
      %p163 = scmp.eq.s32.totalorder %s36, 1
      %p164 = por %p162, %p163
      %p165 = scmp.ne.s32.totalorder %s156, %s157
      %p166 = scmp.eq.s32.totalorder %s36, 0
      %p167 = por %p165, %p166
      %p168 = scmp.ne.s32.totalorder %s156, %s157
      %p169 = scmp.eq.s32.totalorder %s37, 1
      %p170 = por %p168, %p169
      %p172 = scmp.ne.s32.totalorder %s157, %s171
      %p173 = scmp.eq.s32.totalorder %s37, 0
      %p174 = por %p172, %p173
      %s176 = sadd.s32 %s175, 1
      %p179 = scmp.eq.s32.totalorder %s31, 1
      %p180 = scmp.ne.s32.totalorder %s175, %s177
      %p181 = scmp.eq.s32.totalorder %s31, 0
      %p182 = por %p180, %p181
      %p183 = scmp.ne.s32.totalorder %s175, %s177
      %p184 = scmp.eq.s32.totalorder %s36, 1
      %p185 = por %p183, %p184
      %p186 = scmp.ne.s32.totalorder %s177, %s178
      %p187 = scmp.eq.s32.totalorder %s36, 0
      %p188 = por %p186, %p187
      %p189 = scmp.ne.s32.totalorder %s177, %s178
      %p190 = scmp.eq.s32.totalorder %s37, 1
      %p191 = por %p189, %p190
      %p193 = scmp.ne.s32.totalorder %s178, %s192
      %p194 = scmp.eq.s32.totalorder %s37, 0
      %p195 = por %p193, %p194
      %s197 = sadd.s32 %s196, 1
      %p200 = scmp.eq.s32.totalorder %s31, 1
      %p201 = scmp.ne.s32.totalorder %s196, %s198
      %p202 = scmp.eq.s32.totalorder %s31, 0
      %p203 = por %p201, %p202
      %p204 = scmp.ne.s32.totalorder %s196, %s198
      %p205 = scmp.eq.s32.totalorder %s36, 1
      %p206 = por %p204, %p205
      %p207 = scmp.ne.s32.totalorder %s198, %s199
      %p208 = scmp.eq.s32.totalorder %s36, 0
      %p209 = por %p207, %p208
      %p210 = scmp.ne.s32.totalorder %s198, %s199
      %p211 = scmp.eq.s32.totalorder %s37, 1
      %p212 = por %p210, %p211
      %p214 = scmp.ne.s32.totalorder %s199, %s213
      %p215 = scmp.eq.s32.totalorder %s37, 0
      %p216 = por %p214, %p215
      %s218 = sadd.s32 %s217, 1
      %p221 = scmp.eq.s32.totalorder %s31, 1
      %p222 = scmp.ne.s32.totalorder %s217, %s219
      %p223 = scmp.eq.s32.totalorder %s31, 0
      %p224 = por %p222, %p223
      %p225 = scmp.ne.s32.totalorder %s217, %s219
      %p226 = scmp.eq.s32.totalorder %s36, 1
      %p227 = por %p225, %p226
      %p228 = scmp.ne.s32.totalorder %s219, %s220
      %p229 = scmp.eq.s32.totalorder %s36, 0
      %p230 = por %p228, %p229
      %p231 = scmp.ne.s32.totalorder %s219, %s220
      %p232 = scmp.eq.s32.totalorder %s37, 1
      %p233 = por %p231, %p232
      %p235 = scmp.ne.s32.totalorder %s220, %s234
      %p236 = scmp.eq.s32.totalorder %s37, 0
      %p237 = por %p235, %p236
      %s239 = sadd.s32 %s238, 1
      %p242 = scmp.eq.s32.totalorder %s31, 1
      %p243 = scmp.ne.s32.totalorder %s238, %s240
      %p244 = scmp.eq.s32.totalorder %s31, 0
      %p245 = por %p243, %p244
      %p246 = scmp.ne.s32.totalorder %s238, %s240
      %p247 = scmp.eq.s32.totalorder %s36, 1
      %p248 = por %p246, %p247
      %p249 = scmp.ne.s32.totalorder %s240, %s241
      %p250 = scmp.eq.s32.totalorder %s36, 0
      %p251 = por %p249, %p250
      %p252 = scmp.ne.s32.totalorder %s240, %s241
      %p253 = scmp.eq.s32.totalorder %s37, 1
      %p254 = por %p252, %p253
      %p256 = scmp.ne.s32.totalorder %s241, %s255
      %p257 = scmp.eq.s32.totalorder %s37, 0
      %p258 = por %p256, %p257
      %s260 = sadd.s32 %s259, 1
      %p263 = scmp.eq.s32.totalorder %s31, 1
      %p264 = scmp.ne.s32.totalorder %s259, %s261
      %p265 = scmp.eq.s32.totalorder %s31, 0
      %p266 = por %p264, %p265
      %p267 = scmp.ne.s32.totalorder %s259, %s261
      %p268 = scmp.eq.s32.totalorder %s36, 1
      %p269 = por %p267, %p268
      %p270 = scmp.ne.s32.totalorder %s261, %s262
      %p271 = scmp.eq.s32.totalorder %s36, 0
      %p272 = por %p270, %p271
      %p273 = scmp.ne.s32.totalorder %s261, %s262
      %p274 = scmp.eq.s32.totalorder %s37, 1
      %p275 = por %p273, %p274
      %p277 = scmp.ne.s32.totalorder %s262, %s276
      %p278 = scmp.eq.s32.totalorder %s37, 0
      %p279 = por %p277, %p278
      %s281 = sadd.s32 %s280, 1
      %p284 = scmp.eq.s32.totalorder %s31, 1
      %p285 = scmp.ne.s32.totalorder %s280, %s282
      %p286 = scmp.eq.s32.totalorder %s31, 0
      %p287 = por %p285, %p286
      %p288 = scmp.ne.s32.totalorder %s280, %s282
      %p289 = scmp.eq.s32.totalorder %s36, 1
      %p290 = por %p288, %p289
      %p291 = scmp.ne.s32.totalorder %s282, %s283
      %p292 = scmp.eq.s32.totalorder %s36, 0
      %p293 = por %p291, %p292
      %p294 = scmp.ne.s32.totalorder %s282, %s283
      %p295 = scmp.eq.s32.totalorder %s37, 1
      %p296 = por %p294, %p295
      %p298 = scmp.ne.s32.totalorder %s283, %s297
      %p299 = scmp.eq.s32.totalorder %s37, 0
      %p300 = por %p298, %p299
      %s302 = sadd.s32 %s301, 1
      %p305 = scmp.eq.s32.totalorder %s31, 1
      %p306 = scmp.ne.s32.totalorder %s301, %s303
      %p307 = scmp.eq.s32.totalorder %s31, 0
      %p308 = por %p306, %p307
      %p309 = scmp.ne.s32.totalorder %s301, %s303
      %p310 = scmp.eq.s32.totalorder %s36, 1
      %p311 = por %p309, %p310
      %p312 = scmp.ne.s32.totalorder %s303, %s304
      %p313 = scmp.eq.s32.totalorder %s36, 0
      %p314 = por %p312, %p313
      %p315 = scmp.ne.s32.totalorder %s303, %s304
      %p316 = scmp.eq.s32.totalorder %s37, 1
      %p317 = por %p315, %p316
      %p319 = scmp.ne.s32.totalorder %s304, %s318
      %p320 = scmp.eq.s32.totalorder %s37, 0
      %p321 = por %p319, %p320
      %s322 = ssub.s32 %s31, %s38
      %p323 = scmp.eq.s32.totalorder %s322, 0
      %s325 = sadd.s32 %s324, 1
      %s326 = scalar_select %p323, %s324, %s325
      %p329 = pneg %p323
      %p330 = scmp.eq.s32.totalorder %s31, 1
      %p331 = por %p329, %p330
      %p332 = scmp.ne.s32.totalorder %s324, %s327
      %p333 = scmp.eq.s32.totalorder %s31, 0
      %p334 = por %p332, %p333
      %p335 = scmp.ne.s32.totalorder %s324, %s327
      %p336 = scmp.eq.s32.totalorder %s36, 1
      %p337 = por %p335, %p336
      %p338 = scmp.ne.s32.totalorder %s327, %s328
      %p339 = scmp.eq.s32.totalorder %s36, 0
      %p340 = por %p338, %p339
      %p341 = scmp.ne.s32.totalorder %s327, %s328
      %p342 = scmp.eq.s32.totalorder %s37, 1
      %p343 = por %p341, %p342
      %p345 = scmp.ne.s32.totalorder %s328, %s344
      %p346 = scmp.eq.s32.totalorder %s37, 0
      %p347 = por %p345, %p346
      %p348 = scmp.le.s32.totalorder 1, %s31
      %p349 = scmp.lt.s32.totalorder %s31, 3
      %p350 = pnand %p348, %p349
      %p351 = pneg %p350
      // Predicated region
      $region9: #{tpu_custom_call.1} parent=5 // pred_check
        _
      $region10: #{tpu_custom_call.1} parent=5 // pred_check_branch
        %353 = sbr.rel (%p350) target = $region12
      $region11: #{tpu_custom_call.1} parent=5 // pred_region
        %s354 = ssub.s32 %s31, 1
        // Predicated region
        $region13: #{tpu_custom_call.1} parent=11 // pred_check
          %p355 = pneg %p104
        $region14: #{tpu_custom_call.1} parent=11 // pred_check_branch
          %357 = sbr.rel (%p355) target = $region16
        $region15: #{tpu_custom_call.1} parent=11 // pred_region
          %359 = vsyncadd [#allocation6], 0
          %s361 = sshll.u32 %s2, 4
          %s362 = int_to_ptr.hbm [resolvable:$true] %s361
          %s363 = sshll.u32 [#allocation7], 4
          %s364 = int_to_ptr.vmem [resolvable:$true] %s363
          %366 = dma.hbm_to_vmem [thread:$0]  %s362, 64, %s364, [#allocation6]
        $region16: #{tpu_custom_call.1} parent=11 // pred_fallthru
          _
        // Predicated region
        $region17: #{tpu_custom_call.1} parent=11 // pred_check
          %p367 = pneg %p125
        $region18: #{tpu_custom_call.1} parent=11 // pred_check_branch
          %369 = sbr.rel (%p367) target = $region20
        $region19: #{tpu_custom_call.1} parent=11 // pred_region
          _
        $region20: #{tpu_custom_call.1} parent=11 // pred_fallthru
          _
        // Predicated region
        $region21: #{tpu_custom_call.1} parent=11 // pred_check
          %p370 = pneg %p146
        $region22: #{tpu_custom_call.1} parent=11 // pred_check_branch
          %372 = sbr.rel (%p370) target = $region24
        $region23: #{tpu_custom_call.1} parent=11 // pred_region
          %374 = vsyncadd [#allocation9], 0
          %s376 = sshll.u32 %s4, 4
          %s377 = int_to_ptr.hbm [resolvable:$true] %s376
          %s378 = sshll.u32 [#allocation8], 4
          %s379 = int_to_ptr.vmem [resolvable:$true] %s378
          %381 = dma.hbm_to_vmem [thread:$0]  %s377, 64, %s379, [#allocation9]
        $region24: #{tpu_custom_call.1} parent=11 // pred_fallthru
          _
        // Predicated region
        $region25: #{tpu_custom_call.1} parent=11 // pred_check
          %p382 = pneg %p167
        $region26: #{tpu_custom_call.1} parent=11 // pred_check_branch
          %384 = sbr.rel (%p382) target = $region28
        $region27: #{tpu_custom_call.1} parent=11 // pred_region
          _
        $region28: #{tpu_custom_call.1} parent=11 // pred_fallthru
          _
        // Predicated region
        $region29: #{tpu_custom_call.1} parent=11 // pred_check
          %p385 = pneg %p188
        $region30: #{tpu_custom_call.1} parent=11 // pred_check_branch
          %387 = sbr.rel (%p385) target = $region32
        $region31: #{tpu_custom_call.1} parent=11 // pred_region
          %389 = vsyncadd [#allocation9], 0
          %s390 = sshll.u32 %s6, 4
          %s391 = int_to_ptr.hbm [resolvable:$true] %s390
          %s392 = sshll.u32 [#allocation10], 4
          %s393 = int_to_ptr.vmem [resolvable:$true] %s392
          %398 = dma.hbm_to_vmem [thread:$0]  %s391, 1024, %s393, [#allocation9], 64, 64, 4
        $region32: #{tpu_custom_call.1} parent=11 // pred_fallthru
          _
        // Predicated region
        $region33: #{tpu_custom_call.1} parent=11 // pred_check
          %p399 = pneg %p209
        $region34: #{tpu_custom_call.1} parent=11 // pred_check_branch
          %401 = sbr.rel (%p399) target = $region36
        $region35: #{tpu_custom_call.1} parent=11 // pred_region
          _
        $region36: #{tpu_custom_call.1} parent=11 // pred_fallthru
          _
        // Predicated region
        $region37: #{tpu_custom_call.1} parent=11 // pred_check
          %p402 = pneg %p230
        $region38: #{tpu_custom_call.1} parent=11 // pred_check_branch
          %404 = sbr.rel (%p402) target = $region40
        $region39: #{tpu_custom_call.1} parent=11 // pred_region
          %406 = vsyncadd [#allocation12], 0
          %s407 = sshll.u32 %s8, 4
          %s408 = int_to_ptr.hbm [resolvable:$true] %s407
          %s409 = sshll.u32 [#allocation11], 4
          %s410 = int_to_ptr.vmem [resolvable:$true] %s409
          %415 = dma.hbm_to_vmem [thread:$0]  %s408, 1024, %s410, [#allocation12], 64, 64, 4
        $region40: #{tpu_custom_call.1} parent=11 // pred_fallthru
          _
        // Predicated region
        $region41: #{tpu_custom_call.1} parent=11 // pred_check
          %p416 = pneg %p251
        $region42: #{tpu_custom_call.1} parent=11 // pred_check_branch
          %418 = sbr.rel (%p416) target = $region44
        $region43: #{tpu_custom_call.1} parent=11 // pred_region
          %420 = vsyncadd [#allocation12], 0
          %s422 = sshll.u32 %s9, 4
          %s423 = int_to_ptr.hbm [resolvable:$true] %s422
          %s424 = sshll.u32 [#allocation13], 4
          %s425 = int_to_ptr.vmem [resolvable:$true] %s424
          %427 = dma.hbm_to_vmem [thread:$0]  %s423, 16, %s425, [#allocation12]
        $region44: #{tpu_custom_call.1} parent=11 // pred_fallthru
          _
        // Predicated region
        $region45: #{tpu_custom_call.1} parent=11 // pred_check
          %p428 = pneg %p272
        $region46: #{tpu_custom_call.1} parent=11 // pred_check_branch
          %430 = sbr.rel (%p428) target = $region48
        $region47: #{tpu_custom_call.1} parent=11 // pred_region
          %432 = vsyncadd [#allocation15], 0
          %s433 = sshll.u32 %s10, 4
          %s434 = int_to_ptr.hbm [resolvable:$true] %s433
          %s435 = sshll.u32 [#allocation14], 4
          %s436 = int_to_ptr.vmem [resolvable:$true] %s435
          %441 = dma.hbm_to_vmem [thread:$0]  %s434, 1024, %s436, [#allocation15], 64, 64, 4
        $region48: #{tpu_custom_call.1} parent=11 // pred_fallthru
          _
        // Predicated region
        $region49: #{tpu_custom_call.1} parent=11 // pred_check
          %p442 = pneg %p293
        $region50: #{tpu_custom_call.1} parent=11 // pred_check_branch
          %444 = sbr.rel (%p442) target = $region52
        $region51: #{tpu_custom_call.1} parent=11 // pred_region
          %446 = vsyncadd [#allocation15], 0
          %s448 = sshll.u32 %s11, 4
          %s449 = int_to_ptr.hbm [resolvable:$true] %s448
          %s450 = sshll.u32 [#allocation16], 4
          %s451 = int_to_ptr.vmem [resolvable:$true] %s450
          %453 = dma.hbm_to_vmem [thread:$0]  %s449, 16, %s451, [#allocation15]
        $region52: #{tpu_custom_call.1} parent=11 // pred_fallthru
          _
        // Predicated region
        $region53: #{tpu_custom_call.1} parent=11 // pred_check
          %p454 = pneg %p314
        $region54: #{tpu_custom_call.1} parent=11 // pred_check_branch
          %456 = sbr.rel (%p454) target = $region56
        $region55: #{tpu_custom_call.1} parent=11 // pred_region
          _
        $region56: #{tpu_custom_call.1} parent=11 // pred_fallthru
          _
      $region12: #{tpu_custom_call.1} parent=5 // pred_fallthru
        _
      %p457 = scmp.lt.s32.totalorder %s31, 2
      // Predicated region
      $region57: #{tpu_custom_call.1} parent=5 // pred_check
        %p458 = pneg %p457
      $region58: #{tpu_custom_call.1} parent=5 // pred_check_branch
        %460 = sbr.rel (%p458) target = $region60
      $region59: #{tpu_custom_call.1} parent=5 // pred_region
        // Predicated region
        $region61: #{tpu_custom_call.1} parent=59 // pred_check
          %p461 = pneg %p51
        $region62: #{tpu_custom_call.1} parent=59 // pred_check_branch
          %463 = sbr.rel (%p461) target = $region64
        $region63: #{tpu_custom_call.1} parent=59 // pred_region
          %s464 = sand.u32 %s41, 1
          %s465 = scalar_lea.sflag [#allocation3], %s464
          %s466 = sand.u32 %s41, 1
          %s467 = smul.addr %s466, 16
          %s468 = scalar_lea.vmem [#allocation2], %s467
          %s469 = smul.u32 2, %s31
          %471 = vsyncadd %s465, 0
          %s472 = smul.addr %s469, 8
          %s473 = scalar_lea.hbm %s0, %s472
          %s474 = sshll.u32 %s473, 4
          %s475 = int_to_ptr.hbm [resolvable:$true] %s474
          %s476 = sshll.u32 %s468, 4
          %s477 = int_to_ptr.vmem [resolvable:$true] %s476
          %482 = dma.hbm_to_vmem [thread:$0]  %s475, 256, %s477, %s465, 128, 128, 8
        $region64: #{tpu_custom_call.1} parent=59 // pred_fallthru
          _
        // Predicated region
        $region65: #{tpu_custom_call.1} parent=59 // pred_check
          %p483 = pneg %p77
        $region66: #{tpu_custom_call.1} parent=59 // pred_check_branch
          %485 = sbr.rel (%p483) target = $region68
        $region67: #{tpu_custom_call.1} parent=59 // pred_region
          %s486 = sand.u32 %s31, 1
          %s487 = scalar_lea.sflag [#allocation6], %s486
          %s488 = sand.u32 %s67, 1
          %s489 = smul.addr %s488, 16
          %s490 = scalar_lea.vmem [#allocation5], %s489
          %s491 = smul.u32 2, %s31
          %493 = vsyncadd %s487, 0
          %s494 = smul.addr %s491, 8
          %s495 = scalar_lea.hbm %s1, %s494
          %s496 = sshll.u32 %s495, 4
          %s497 = int_to_ptr.hbm [resolvable:$true] %s496
          %s498 = sshll.u32 %s490, 4
          %s499 = int_to_ptr.vmem [resolvable:$true] %s498
          %504 = dma.hbm_to_vmem [thread:$0]  %s497, 256, %s499, %s487, 128, 128, 8
        $region68: #{tpu_custom_call.1} parent=59 // pred_fallthru
          _
      $region60: #{tpu_custom_call.1} parent=5 // pred_fallthru
        _
      %p505 = scmp.le.s32.totalorder 1, %s31
      %p506 = scmp.lt.s32.totalorder %s31, 3
      %p507 = pnand %p505, %p506
      %p508 = pneg %p507
      // Predicated region
      $region69: #{tpu_custom_call.1} parent=5 // pred_check
        _
      $region70: #{tpu_custom_call.1} parent=5 // pred_check_branch
        %510 = sbr.rel (%p507) target = $region72
      $region71: #{tpu_custom_call.1} parent=5 // pred_region
        %s511 = ssub.s32 %s31, 1
        %s512 = sand.u32 %s44, 1
        %s513 = scalar_lea.sflag [#allocation3], %s512
        %s514 = sand.u32 %s44, 1
        %s515 = smul.addr %s514, 16
        %s516 = scalar_lea.vmem [#allocation2], %s515
        // Predicated region
        $region73: #{tpu_custom_call.1} parent=71 // pred_check
          %p517 = pneg %p57
        $region74: #{tpu_custom_call.1} parent=71 // pred_check_branch
          %519 = sbr.rel (%p517) target = $region76
        $region75: #{tpu_custom_call.1} parent=71 // pred_region
          %521 = dma.done %s513, 256
        $region76: #{tpu_custom_call.1} parent=71 // pred_fallthru
          _
        %s522 = sand.u32 %s36, 1
        %s523 = scalar_lea.sflag [#allocation6], %s522
        %s524 = sand.u32 %s70, 1
        %s525 = smul.addr %s524, 16
        %s526 = scalar_lea.vmem [#allocation5], %s525
        // Predicated region
        $region77: #{tpu_custom_call.1} parent=71 // pred_check
          %p527 = pneg %p83
        $region78: #{tpu_custom_call.1} parent=71 // pred_check_branch
          %529 = sbr.rel (%p527) target = $region80
        $region79: #{tpu_custom_call.1} parent=71 // pred_region
          %531 = dma.done %s523, 256
        $region80: #{tpu_custom_call.1} parent=71 // pred_fallthru
          _
        // Predicated region
        $region81: #{tpu_custom_call.1} parent=71 // pred_check
          %p532 = pneg %p104
        $region82: #{tpu_custom_call.1} parent=71 // pred_check_branch
          %534 = sbr.rel (%p532) target = $region84
        $region83: #{tpu_custom_call.1} parent=71 // pred_region
          %536 = dma.done [#allocation6], 64
        $region84: #{tpu_custom_call.1} parent=71 // pred_fallthru
          _
        // Predicated region
        $region85: #{tpu_custom_call.1} parent=71 // pred_check
          %p537 = pneg %p146
        $region86: #{tpu_custom_call.1} parent=71 // pred_check_branch
          %539 = sbr.rel (%p537) target = $region88
        $region87: #{tpu_custom_call.1} parent=71 // pred_region
          %541 = dma.done [#allocation9], 64
        $region88: #{tpu_custom_call.1} parent=71 // pred_fallthru
          _
        // Predicated region
        $region89: #{tpu_custom_call.1} parent=71 // pred_check
          %p542 = pneg %p188
        $region90: #{tpu_custom_call.1} parent=71 // pred_check_branch
          %544 = sbr.rel (%p542) target = $region92
        $region91: #{tpu_custom_call.1} parent=71 // pred_region
          %546 = dma.done [#allocation9], 1024
        $region92: #{tpu_custom_call.1} parent=71 // pred_fallthru
          _
        // Predicated region
        $region93: #{tpu_custom_call.1} parent=71 // pred_check
          %p547 = pneg %p230
        $region94: #{tpu_custom_call.1} parent=71 // pred_check_branch
          %549 = sbr.rel (%p547) target = $region96
        $region95: #{tpu_custom_call.1} parent=71 // pred_region
          %551 = dma.done [#allocation12], 1024
        $region96: #{tpu_custom_call.1} parent=71 // pred_fallthru
          _
        // Predicated region
        $region97: #{tpu_custom_call.1} parent=71 // pred_check
          %p552 = pneg %p251
        $region98: #{tpu_custom_call.1} parent=71 // pred_check_branch
          %554 = sbr.rel (%p552) target = $region100
        $region99: #{tpu_custom_call.1} parent=71 // pred_region
          %556 = dma.done [#allocation12], 16
        $region100: #{tpu_custom_call.1} parent=71 // pred_fallthru
          _
        // Predicated region
        $region101: #{tpu_custom_call.1} parent=71 // pred_check
          %p557 = pneg %p272
        $region102: #{tpu_custom_call.1} parent=71 // pred_check_branch
          %559 = sbr.rel (%p557) target = $region104
        $region103: #{tpu_custom_call.1} parent=71 // pred_region
          %561 = dma.done [#allocation15], 1024
        $region104: #{tpu_custom_call.1} parent=71 // pred_fallthru
          _
        // Predicated region
        $region105: #{tpu_custom_call.1} parent=71 // pred_check
          %p562 = pneg %p293
        $region106: #{tpu_custom_call.1} parent=71 // pred_check_branch
          %564 = sbr.rel (%p562) target = $region108
        $region107: #{tpu_custom_call.1} parent=71 // pred_region
          %566 = dma.done [#allocation15], 16
        $region108: #{tpu_custom_call.1} parent=71 // pred_fallthru
          _
        %s567 = sand.u32 %s44, 1
        %s568 = scalar_lea.sflag [#allocation3], %s567
        %s569 = sand.u32 %s44, 1
        %s570 = smul.addr %s569, 16
        %s571 = scalar_lea.vmem [#allocation2], %s570
        %p572 = pneg %p57
        %p573 = pneg %p54
        %s574 = sand.u32 %s36, 1
        %s575 = scalar_lea.sflag [#allocation6], %s574
        %s576 = sand.u32 %s70, 1
        %s577 = smul.addr %s576, 16
        %s578 = scalar_lea.vmem [#allocation5], %s577
        %p579 = pneg %p83
        %p580 = pneg %p80
        %p581 = pneg %p104
        %p582 = pneg %p101
        %p583 = pneg %p125
        %p584 = pneg %p122
        %p585 = pneg %p146
        %p586 = pneg %p143
        %p587 = pneg %p167
        %p588 = pneg %p164
        %p589 = pneg %p188
        %p590 = pneg %p185
        %p591 = pneg %p209
        %p592 = pneg %p206
        %p593 = pneg %p230
        %p594 = pneg %p227
        %p595 = pneg %p251
        %p596 = pneg %p248
        %p597 = pneg %p272
        %p598 = pneg %p269
        %p599 = pneg %p293
        %p600 = pneg %p290
        %p601 = pneg %p314
        %p602 = pneg %p311
        %p603 = pneg %p340
        %p604 = pneg %p337
        %s605 = sand.u32 %s327, 1
        %s606 = scalar_lea.sflag [#allocation4], %s605
        %s607 = sand.u32 %s327, 1
        %s608 = smul.addr %s607, 8
        %s609 = scalar_lea.vmem [#allocation17], %s608
        %s610 = smul.u32 2, %s36
        %s611 = smul.u32 2, %s36
        %s612 = smul.u32 2, %s36
        %v614 = vld [vmem:[%s516] sm:$0xff]
        %v615 = vld [vmem:[%s516 + $0x8] sm:$0xff]
        %v616 = vpack.c.bf16 %v614, %v614
        %v617 = vpack.c.bf16 %v615, %v615
        %v618 = vld [vmem:[%s526] sm:$0xff]
        %v619 = vld [vmem:[%s526 + $0x8] sm:$0xff]
        %v620 = vpack.c.bf16 %v618, %v618
        %v621 = vpack.c.bf16 %v619, %v619
        %v622 = vld [vmem:[#allocation7] sm:$0xf]
        %v623 = vld [vmem:[%s3] sm:$0x1]
        %v625 = vperm.slane %v623, 0
        %v629 = vunpack.c.l.b16 %v616
        %v630 = vunpack.c.l.b16 %v617
        %v631 = vpack.c.b16 %v630, %v629
        %vm632 = vcmask 64512
        %v634 = vsel %vm632, %v631, 0
        %vm636 = vcmask 1043456
        %v638 = vsel %vm636, %v622, 0
        %640 = vmatpush.bf16.msra.mxu0 0
        %641 = vmatpush.bf16.msra.mxu0 0
        %642 = vmatpush.bf16.msra.mxu0 0
        %643 = vmatpush.bf16.msra.mxu0 0
        %644 = vmatpush.bf16.msra.mxu0 0
        %645 = vmatpush.bf16.msra.mxu0 0
        %646 = vmatpush.bf16.msra.mxu0 0
        %647 = vmatpush.bf16.msra.mxu0 %v638
        %648 = vmatmul.bf16.gmra.mxu0 %v634
        %v649 = vpop.f32.mrf.mxu0
        %v650 = vadd.f32 %v625, %v649
        %v651 = vpop.f32.mrf.mxu0
        %v652 = vadd.f32 %v625, %v651
        %653 = vdwg.mxu0
        %v654 = vld [vmem:[#allocation8] sm:$0xf]
        %v655 = vld [vmem:[%s5] sm:$0x1]
        %v657 = vperm.slane %v655, 0
        %v661 = vunpack.c.l.b16 %v620
        %v662 = vunpack.c.l.b16 %v621
        %v663 = vpack.c.b16 %v662, %v661
        %v665 = vsel %vm632, %v663, 0
        %v668 = vsel %vm636, %v654, 0
        %670 = vmatpush.bf16.msra.mxu0 0
        %671 = vmatpush.bf16.msra.mxu0 0
        %672 = vmatpush.bf16.msra.mxu0 0
        %673 = vmatpush.bf16.msra.mxu0 0
        %674 = vmatpush.bf16.msra.mxu0 0
        %675 = vmatpush.bf16.msra.mxu0 0
        %676 = vmatpush.bf16.msra.mxu0 0
        %677 = vmatpush.bf16.msra.mxu0 %v668
        %678 = vmatmul.bf16.gmra.mxu0 %v665
        %v679 = vpop.f32.mrf.mxu0
        %v680 = vadd.f32 %v657, %v679
        %v681 = vpop.f32.mrf.mxu0
        %v682 = vadd.f32 %v657, %v681
        %683 = vdwg.mxu0
        %v684 = vpack.c.bf16 %v652, %v650
        %v685 = vld [vmem:[#allocation10] sm:$0xf]
        %v686 = vld [vmem:[#allocation10 + $0x4] sm:$0xf]
        %v687 = vld [vmem:[#allocation10 + $0x8] sm:$0xf]
        %v688 = vld [vmem:[#allocation10 + $0xc] sm:$0xf]
        %v689 = vld [vmem:[#allocation10 + $0x10] sm:$0xf]
        %v690 = vld [vmem:[#allocation10 + $0x14] sm:$0xf]
        %v691 = vld [vmem:[#allocation10 + $0x18] sm:$0xf]
        %v692 = vld [vmem:[#allocation10 + $0x1c] sm:$0xf]
        %v693 = vld [vmem:[#allocation10 + $0x20] sm:$0xf]
        %v694 = vld [vmem:[#allocation10 + $0x24] sm:$0xf]
        %v695 = vld [vmem:[#allocation10 + $0x28] sm:$0xf]
        %v696 = vld [vmem:[#allocation10 + $0x2c] sm:$0xf]
        %v697 = vld [vmem:[#allocation10 + $0x30] sm:$0xf]
        %v698 = vld [vmem:[#allocation10 + $0x34] sm:$0xf]
        %v699 = vld [vmem:[#allocation10 + $0x38] sm:$0xf]
        %v700 = vld [vmem:[#allocation10 + $0x3c] sm:$0xf]
        %v701 = vld [vmem:[%s7] sm:$0x1]
        %v703 = vperm.slane %v701, 0
        %v721 = vunpack.c.l.b16 %v685
        %v722 = vunpack.c.l.b16 %v686
        %v723 = vunpack.c.l.b16 %v687
        %v724 = vunpack.c.l.b16 %v688
        %v725 = vunpack.c.l.b16 %v689
        %v726 = vunpack.c.l.b16 %v690
        %v727 = vunpack.c.l.b16 %v691
        %v728 = vunpack.c.l.b16 %v692
        %v729 = vunpack.c.l.b16 %v693
        %v730 = vunpack.c.l.b16 %v694
        %v731 = vunpack.c.l.b16 %v695
        %v732 = vunpack.c.l.b16 %v696
        %v733 = vunpack.c.l.b16 %v697
        %v734 = vunpack.c.l.b16 %v698
        %v735 = vunpack.c.l.b16 %v699
        %v736 = vunpack.c.l.b16 %v700
        %v737 = vpack.c.b16 %v722, %v721
        %v738 = vpack.c.b16 %v724, %v723
        %v739 = vpack.c.b16 %v726, %v725
        %v740 = vpack.c.b16 %v728, %v727
        %v741 = vpack.c.b16 %v730, %v729
        %v742 = vpack.c.b16 %v732, %v731
        %v743 = vpack.c.b16 %v734, %v733
        %v744 = vpack.c.b16 %v736, %v735
        %753 = vmatpush.bf16.msra.mxu0 %v744
        %754 = vmatpush.bf16.msra.mxu0 %v743
        %755 = vmatpush.bf16.msra.mxu0 %v742
        %756 = vmatpush.bf16.msra.mxu0 %v741
        %757 = vmatpush.bf16.msra.mxu0 %v740
        %758 = vmatpush.bf16.msra.mxu0 %v739
        %759 = vmatpush.bf16.msra.mxu0 %v738
        %760 = vmatpush.bf16.msra.mxu0 %v737
        %761 = vmatmul.bf16.gmra.mxu0 %v684
        %v762 = vpop.f32.mrf.mxu0
        %v763 = vadd.f32 %v703, %v762
        %v764 = vpop.f32.mrf.mxu0
        %v765 = vadd.f32 %v703, %v764
        %766 = vdwg.mxu0
        %v767 = vpack.c.bf16 %v682, %v680
        %v768 = vld [vmem:[#allocation11] sm:$0xf]
        %v769 = vld [vmem:[#allocation11 + $0x4] sm:$0xf]
        %v770 = vld [vmem:[#allocation11 + $0x8] sm:$0xf]
        %v771 = vld [vmem:[#allocation11 + $0xc] sm:$0xf]
        %v772 = vld [vmem:[#allocation11 + $0x10] sm:$0xf]
        %v773 = vld [vmem:[#allocation11 + $0x14] sm:$0xf]
        %v774 = vld [vmem:[#allocation11 + $0x18] sm:$0xf]
        %v775 = vld [vmem:[#allocation11 + $0x1c] sm:$0xf]
        %v776 = vld [vmem:[#allocation11 + $0x20] sm:$0xf]
        %v777 = vld [vmem:[#allocation11 + $0x24] sm:$0xf]
        %v778 = vld [vmem:[#allocation11 + $0x28] sm:$0xf]
        %v779 = vld [vmem:[#allocation11 + $0x2c] sm:$0xf]
        %v780 = vld [vmem:[#allocation11 + $0x30] sm:$0xf]
        %v781 = vld [vmem:[#allocation11 + $0x34] sm:$0xf]
        %v782 = vld [vmem:[#allocation11 + $0x38] sm:$0xf]
        %v783 = vld [vmem:[#allocation11 + $0x3c] sm:$0xf]
        %v800 = vunpack.c.l.b16 %v768
        %v801 = vunpack.c.l.b16 %v769
        %v802 = vunpack.c.l.b16 %v770
        %v803 = vunpack.c.l.b16 %v771
        %v804 = vunpack.c.l.b16 %v772
        %v805 = vunpack.c.l.b16 %v773
        %v806 = vunpack.c.l.b16 %v774
        %v807 = vunpack.c.l.b16 %v775
        %v808 = vunpack.c.l.b16 %v776
        %v809 = vunpack.c.l.b16 %v777
        %v810 = vunpack.c.l.b16 %v778
        %v811 = vunpack.c.l.b16 %v779
        %v812 = vunpack.c.l.b16 %v780
        %v813 = vunpack.c.l.b16 %v781
        %v814 = vunpack.c.l.b16 %v782
        %v815 = vunpack.c.l.b16 %v783
        %v816 = vpack.c.b16 %v801, %v800
        %v817 = vpack.c.b16 %v803, %v802
        %v818 = vpack.c.b16 %v805, %v804
        %v819 = vpack.c.b16 %v807, %v806
        %v820 = vpack.c.b16 %v809, %v808
        %v821 = vpack.c.b16 %v811, %v810
        %v822 = vpack.c.b16 %v813, %v812
        %v823 = vpack.c.b16 %v815, %v814
        %832 = vmatpush.bf16.msra.mxu0 %v823
        %833 = vmatpush.bf16.msra.mxu0 %v822
        %834 = vmatpush.bf16.msra.mxu0 %v821
        %835 = vmatpush.bf16.msra.mxu0 %v820
        %836 = vmatpush.bf16.msra.mxu0 %v819
        %837 = vmatpush.bf16.msra.mxu0 %v818
        %838 = vmatpush.bf16.msra.mxu0 %v817
        %839 = vmatpush.bf16.msra.mxu0 %v816
        %840 = vmatmul.bf16.gmra.mxu0 %v767
        %v841 = vpop.f32.mrf.mxu0
        %v842 = vadd.f32 0.0, %v841
        %v843 = vpop.f32.mrf.mxu0
        %v844 = vadd.f32 0.0, %v843
        %845 = vdwg.mxu0
        %v846 = vadd.f32 %v763, %v842
        %v847 = vadd.f32 %v765, %v844
        %v848 = vld [vmem:[#allocation13] sm:$0x1]
        %v850 = vperm.slane %v848, 0
        %v852 = vadd.f32 %v846, %v850
        %v853 = vadd.f32 %v847, %v850
        %v854 = vxor.u32 %v852, 2147483648
        %v855 = vxor.u32 %v853, 2147483648
        %v856 = vmul.f32 %v854, 1.442695
        %v857 = vpow.pop %v856
        %v858 = vmul.f32 %v855, 1.442695
        %v859 = vpow.pop %v858
        %v860 = vadd.f32 %v857, 1.0
        %v861 = vadd.f32 %v859, 1.0
        %v862 = vrcp.pop %v860
        %v863 = vmul.f32 %v860, %v862
        %v864 = vsub.f32 1.0, %v863
        %v865 = vmul.f32 %v862, %v864
        %v866 = vadd.f32 %v862, %v865
        %vm867 = vweird.f32 %v860
        %vm868 = vweird.f32 %v862
        %vm869 = vmor %vm867, %vm868
        %v870 = vsel %vm869, %v862, %v866
        %v871 = vand.u32 2147483647, %v860
        %vm872 = vcmp.eq.f32.partialorder %v871, 8.507059e+37
        %v873 = vand.u32 %v860, 2147483648
        %v874 = vor.u32 1.1754944e-38, %v873
        %v875 = vsel %vm872, %v874, %v870
        %v876 = vmul.f32 1.0, %v875
        %v877 = vrcp.pop %v861
        %v878 = vmul.f32 %v861, %v877
        %v879 = vsub.f32 1.0, %v878
        %v880 = vmul.f32 %v877, %v879
        %v881 = vadd.f32 %v877, %v880
        %vm882 = vweird.f32 %v861
        %vm883 = vweird.f32 %v877
        %vm884 = vmor %vm882, %vm883
        %v885 = vsel %vm884, %v877, %v881
        %v886 = vand.u32 2147483647, %v861
        %vm887 = vcmp.eq.f32.partialorder %v886, 8.507059e+37
        %v888 = vand.u32 %v861, 2147483648
        %v889 = vor.u32 1.1754944e-38, %v888
        %v890 = vsel %vm887, %v889, %v885
        %v891 = vmul.f32 1.0, %v890
        %v892 = vmul.f32 %v876, %v650
        %v893 = vmul.f32 %v891, %v652
        %v894 = vsub.f32 1.0, %v876
        %v895 = vsub.f32 1.0, %v891
        %v896 = vmul.f32 %v894, %v680
        %v897 = vmul.f32 %v895, %v682
        %v898 = vadd.f32 %v892, %v896
        %v899 = vadd.f32 %v893, %v897
        %v900 = vpack.c.bf16 %v899, %v898
        %v901 = vld [vmem:[#allocation14] sm:$0xf]
        %v902 = vld [vmem:[#allocation14 + $0x4] sm:$0xf]
        %v903 = vld [vmem:[#allocation14 + $0x8] sm:$0xf]
        %v904 = vld [vmem:[#allocation14 + $0xc] sm:$0xf]
        %v905 = vld [vmem:[#allocation14 + $0x10] sm:$0xf]
        %v906 = vld [vmem:[#allocation14 + $0x14] sm:$0xf]
        %v907 = vld [vmem:[#allocation14 + $0x18] sm:$0xf]
        %v908 = vld [vmem:[#allocation14 + $0x1c] sm:$0xf]
        %v909 = vld [vmem:[#allocation14 + $0x20] sm:$0xf]
        %v910 = vld [vmem:[#allocation14 + $0x24] sm:$0xf]
        %v911 = vld [vmem:[#allocation14 + $0x28] sm:$0xf]
        %v912 = vld [vmem:[#allocation14 + $0x2c] sm:$0xf]
        %v913 = vld [vmem:[#allocation14 + $0x30] sm:$0xf]
        %v914 = vld [vmem:[#allocation14 + $0x34] sm:$0xf]
        %v915 = vld [vmem:[#allocation14 + $0x38] sm:$0xf]
        %v916 = vld [vmem:[#allocation14 + $0x3c] sm:$0xf]
        %v917 = vld [vmem:[#allocation16] sm:$0x1]
        %v919 = vperm.slane %v917, 0
        %v937 = vunpack.c.l.b16 %v901
        %v938 = vunpack.c.l.b16 %v902
        %v939 = vunpack.c.l.b16 %v903
        %v940 = vunpack.c.l.b16 %v904
        %v941 = vunpack.c.l.b16 %v905
        %v942 = vunpack.c.l.b16 %v906
        %v943 = vunpack.c.l.b16 %v907
        %v944 = vunpack.c.l.b16 %v908
        %v945 = vunpack.c.l.b16 %v909
        %v946 = vunpack.c.l.b16 %v910
        %v947 = vunpack.c.l.b16 %v911
        %v948 = vunpack.c.l.b16 %v912
        %v949 = vunpack.c.l.b16 %v913
        %v950 = vunpack.c.l.b16 %v914
        %v951 = vunpack.c.l.b16 %v915
        %v952 = vunpack.c.l.b16 %v916
        %v953 = vpack.c.b16 %v938, %v937
        %v954 = vpack.c.b16 %v940, %v939
        %v955 = vpack.c.b16 %v942, %v941
        %v956 = vpack.c.b16 %v944, %v943
        %v957 = vpack.c.b16 %v946, %v945
        %v958 = vpack.c.b16 %v948, %v947
        %v959 = vpack.c.b16 %v950, %v949
        %v960 = vpack.c.b16 %v952, %v951
        %969 = vmatpush.bf16.msra.mxu0 %v960
        %970 = vmatpush.bf16.msra.mxu0 %v959
        %971 = vmatpush.bf16.msra.mxu0 %v958
        %972 = vmatpush.bf16.msra.mxu0 %v957
        %973 = vmatpush.bf16.msra.mxu0 %v956
        %974 = vmatpush.bf16.msra.mxu0 %v955
        %975 = vmatpush.bf16.msra.mxu0 %v954
        %976 = vmatpush.bf16.msra.mxu0 %v953
        %977 = vmatmul.bf16.gmra.mxu0 %v900
        %v978 = vpop.f32.mrf.mxu0
        %v979 = vadd.f32 %v919, %v978
        %v980 = vpop.f32.mrf.mxu0
        %v981 = vadd.f32 %v919, %v980
        %982 = vdwg.mxu0
        %v983 = vld [vmem:[%s12] sm:$0xff]
        %v984 = vadd.f32 %v979, %v983
        %v985 = vadd.f32 %v981, %v983
        %v986 = vpack.c.bf16 %v984, %v984
        %v987 = vpack.c.bf16 %v985, %v985
        %988 = vst [vmem:[%s609] sm:$0xf] %v986
        %989 = vst [vmem:[%s609 + $0x4] sm:$0xf] %v987
        %s990 = sand.u32 %s327, 1
        %s991 = scalar_lea.sflag [#allocation4], %s990
        %s992 = sand.u32 %s327, 1
        %s993 = smul.addr %s992, 8
        %s994 = scalar_lea.vmem [#allocation17], %s993
        // Predicated region
        $region109: #{tpu_custom_call.1} parent=71 // pred_check
          %p995 = pneg %p337
        $region110: #{tpu_custom_call.1} parent=71 // pred_check_branch
          %997 = sbr.rel (%p995) target = $region112
        $region111: #{tpu_custom_call.1} parent=71 // pred_region
          %s998 = smul.u32 2, %s36
          %1000 = vsyncadd %s991, 0
          %s1001 = smul.addr %s998, 4
          %s1002 = scalar_lea.hbm %s13, %s1001
          %s1003 = sshll.u32 %s994, 4
          %s1004 = int_to_ptr.vmem [resolvable:$true] %s1003
          %s1005 = sshll.u32 %s1002, 4
          %s1006 = int_to_ptr.hbm [resolvable:$true] %s1005
          %1011 = dma.vmem_to_hbm [thread:$0]  %s1004, 128, %s1006, %s991, 64, 64, 4
        $region112: #{tpu_custom_call.1} parent=71 // pred_fallthru
          _
      $region72: #{tpu_custom_call.1} parent=5 // pred_fallthru
        _
      %p1012 = scmp.le.s32.totalorder 2, %s31
      // Predicated region
      $region113: #{tpu_custom_call.1} parent=5 // pred_check
        %p1013 = pneg %p1012
      $region114: #{tpu_custom_call.1} parent=5 // pred_check_branch
        %1015 = sbr.rel (%p1013) target = $region116
      $region115: #{tpu_custom_call.1} parent=5 // pred_region
        %s1016 = ssub.s32 %s31, 2
        // Predicated region
        $region117: #{tpu_custom_call.1} parent=115 // pred_check
          %p1017 = pneg %p343
        $region118: #{tpu_custom_call.1} parent=115 // pred_check_branch
          %1019 = sbr.rel (%p1017) target = $region120
        $region119: #{tpu_custom_call.1} parent=115 // pred_region
          %s1020 = sand.u32 %s328, 1
          %s1021 = scalar_lea.sflag [#allocation4], %s1020
          %s1022 = sand.u32 %s328, 1
          %s1023 = smul.addr %s1022, 8
          %s1024 = scalar_lea.vmem [#allocation17], %s1023
          %1026 = dma.done %s1021, 128
        $region120: #{tpu_custom_call.1} parent=115 // pred_fallthru
          _
      $region116: #{tpu_custom_call.1} parent=5 // pred_fallthru
        _
    $region6: #{tpu_custom_call.1} parent=1 // loop_footer
      %s35 = sadd.s32 1, %s31
    $region7: #{tpu_custom_call.1} parent=1 // loop_footer_branch
      %30 = sbr.rel target = $region3
    $region8: #{tpu_custom_call.1} parent=1 // loop_exit
      _
    %1027 = vsyncpa [#allocation3], 1
    %s1028 = scalar_lea.sflag [#allocation3], 1
    %1029 = vsyncpa %s1028, 1
    %1030 = vsyncpa [#allocation6], 1
    %s1031 = scalar_lea.sflag [#allocation6], 1
    %1032 = vsyncpa %s1031, 1
    %1033 = vsyncpa [#allocation9], 1
    %1034 = vsyncpa [#allocation12], 1
    %1035 = vsyncpa [#allocation15], 1
    %1036 = vsyncpa [#allocation4], 1
    %s1037 = scalar_lea.sflag [#allocation4], 1
    %1038 = vsyncpa %s1037, 1

</llo_original>
